<compile_context>
chip_gen: v7x
topology: tpu7x:2x2x1
jax: 0.10.0
libtpu: 0.0.40
codegen_flags: <defaults>
</compile_context>

<pallas_src>
import jax
import jax.numpy as jnp
from jax.experimental import pallas as pl
from jax.experimental.pallas import tpu as pltpu


# Sublane packing multiple per element size (f32 -> 8, bf16 -> 16, int8/fp8 -> 32).
_SUBLANE_MULT = {4: 8, 2: 16, 1: 32}


def _normalize_kernel(x_ref, scale_ref, bias_ref, o_ref):
    # x_ref / o_ref: (TM, TN) tiles.  scale_ref / bias_ref: (TM, 1) f32 tiles,
    # row-broadcast across the lane dimension.  Math in f32 regardless of the
    # input dtype (matches PyTorch keeping f32 buffers for mean/std).
    x = x_ref[...].astype(jnp.float32)
    o_ref[...] = (x * scale_ref[...] + bias_ref[...]).astype(o_ref.dtype)


def _tpu_budget():
    """Per-generation (block_budget_bytes, vmem_limit_bytes_or_None, min_grid_steps)."""
    kind = ""
    try:
        kind = (getattr(jax.devices()[0], "device_kind", "") or "").lower()
    except Exception:
        pass
    k = kind.replace(" ", "")
    if "v7" in k or "tpu7" in k:
        # Big blocks: 2x(in) + 2x(out) ~ 32 MiB live, raise scoped VMEM to 48 MiB
        # (physical 64 MiB per TC).  min_steps=8 keeps both TensorCores busy.
        return 8 << 20, 48 << 20, 8
    if "v6" in k:
        # 4x4 MiB double-buffered fits the 32 MiB default scoped VMEM.
        return 4 << 20, None, 1
    if "v5" in k:
        # v5e default scoped VMEM is 16 MiB; 2 MiB blocks already amortize the
        # per-step overhead at ~0.8 TB/s HBM.
        return 2 << 20, None, 1
    # Unknown generation: conservative (v5e-safe) default.
    return 2 << 20, None, 1


def _pick_tiles(R, L, elem_bytes, budget_bytes, min_steps):
    """Pick (TM, TN) for the flattened (R, L) view.

    Prefers TN that evenly divides L (no masked edge columns) and TM that is a
    multiple of the dtype's packed-sublane count (no masked sublane edges).
    """
    sub = _SUBLANE_MULT.get(elem_bytes, 8)

    # Small-problem fast path: whole array as a single block.
    if R * L * elem_bytes <= budget_bytes:
        return R, L

    # --- TN (lane dim) ---
    if L < 128:
        TN = L                                    # full extent (only legal choice)
    elif L * elem_bytes * sub <= budget_bytes:
        TN = L                                    # full rows fit: no column tiling
    elif L % 128 == 0:
        # Largest multiple of 128 that divides L and fits the budget with TM=sub:
        # every block is unmasked and fully contiguous.
        max_tn = max(128, budget_bytes // (sub * elem_bytes))
        units = L // 128
        best = 1
        for d in range(1, units + 1):
            if units % d == 0 and d * 128 <= max_tn:
                best = d
        TN = best * 128
    else:
        # L not a multiple of 128 and too big for a full-row slab: fall back to
        # a multiple-of-128 tile with one masked remainder column block.
        max_tn = max(128, budget_bytes // (sub * elem_bytes))
        TN = max(128, min((L // 128) * 128, (max_tn // 128) * 128))

    # --- TM (sublane dim) ---
    if R <= sub:
        TM = R                                    # full extent (only legal choice)
    else:
        budget_rows = max(sub, budget_bytes // (TN * elem_bytes))
        TM = max(sub, min((R // sub) * sub, (budget_rows // sub) * sub))

    # --- Minimum grid size (v7x: shard work across both TensorCores) ---
    def _steps(tm, tn):
        return pl.cdiv(R, tm) * pl.cdiv(L, tn)

    while min_steps > 1 and _steps(TM, TN) < min_steps and TM > sub:
        TM = max(sub, ((TM // 2) // sub) * sub)

    return TM, TN


def normalize_by_channel_mean_std(x, mean, std, block_budget_bytes=None):
    """x: (N, C, H, W), mean/std: (C,).  Returns (x - mean) / std per channel."""
    N, C, H, W = x.shape
    R, L = N * C, H * W

    # Float inputs keep their dtype; non-float inputs promote to f32 (matches
    # PyTorch promotion against the float mean/std buffers).
    out_dtype = x.dtype if jnp.issubdtype(x.dtype, jnp.floating) else jnp.float32

    # Fold (x - mean) / std into x * scale + bias, constants kept in f32.
    mean_f32 = jnp.asarray(mean, jnp.float32)
    std_f32 = jnp.asarray(std, jnp.float32)
    scale = 1.0 / std_f32                         # (C,)
    bias = -mean_f32 * scale                      # (C,)

    # Per-row constants for the flattened (R, L) view: row r = n*C + c -> channel c.
    scale_rows = jnp.tile(scale, N).reshape(R, 1)
    bias_rows = jnp.tile(bias, N).reshape(R, 1)

    x2 = x.reshape(R, L)
    elem_bytes = max(x.dtype.itemsize, jnp.dtype(out_dtype).itemsize)

    budget, vmem_limit, min_steps = _tpu_budget()
    if block_budget_bytes is not None:            # test/tuning override
        budget = block_budget_bytes
    TM, TN = _pick_tiles(R, L, elem_bytes, budget, min_steps)
    grid = (pl.cdiv(R, TM), pl.cdiv(L, TN))

    cost = pl.CostEstimate(
        flops=2 * R * L,
        transcendentals=0,
        bytes_accessed=R * L * (x.dtype.itemsize + jnp.dtype(out_dtype).itemsize) + 8 * R,
    )
    cp_kwargs = dict(dimension_semantics=("parallel", "parallel"))
    if vmem_limit is not None:
        cp_kwargs["vmem_limit_bytes"] = vmem_limit

    out2 = pl.pallas_call(
        _normalize_kernel,
        out_shape=jax.ShapeDtypeStruct((R, L), out_dtype),
        grid=grid,
        in_specs=[
            pl.BlockSpec((TM, TN), lambda i, j: (i, j)),
            pl.BlockSpec((TM, 1), lambda i, j: (i, 0)),
            pl.BlockSpec((TM, 1), lambda i, j: (i, 0)),
        ],
        out_specs=pl.BlockSpec((TM, TN), lambda i, j: (i, j)),
        compiler_params=pltpu.CompilerParams(**cp_kwargs),
        cost_estimate=cost,
    )(x2, scale_rows, bias_rows)

    return out2.reshape(N, C, H, W)


def _reference(x, mean, std):
    xf = x.astype(jnp.float32)
    return (xf - mean[None, :, None, None]) / std[None, :, None, None]


if __name__ == "__main__":
    key = jax.random.PRNGKey(0)

    # --- Test 1: module-default small shape, f32, single-block fast path ---
    N, C, H, W = 2, 4, 16, 16
    mean = jnp.array([0.485, 0.456, 0.406, 0.500], dtype=jnp.float32)
    std = jnp.array([0.229, 0.224, 0.225, 0.250], dtype=jnp.float32)
    x = jax.random.uniform(key, (N, C, H, W), dtype=jnp.float32)

    out = jax.block_until_ready(normalize_by_channel_mean_std(x, mean, std))
    ref = _reference(x, mean, std)
    assert out.shape == x.shape and out.dtype == x.dtype
    assert jnp.allclose(out, ref, rtol=1e-5, atol=1e-5)

    # --- Test 2: ragged row grid (R % TM != 0), f32, forced multi-block tiling ---
    k2 = jax.random.PRNGKey(1)
    mean3 = jnp.array([0.485, 0.456, 0.406], dtype=jnp.float32)
    std3 = jnp.array([0.229, 0.224, 0.225], dtype=jnp.float32)
    x2 = jax.random.uniform(k2, (5, 4, 32, 32), dtype=jnp.float32)   # R=20, L=1024
    mean4 = jnp.array([0.485, 0.456, 0.406, 0.500], dtype=jnp.float32)
    std4 = jnp.array([0.229, 0.224, 0.225, 0.250], dtype=jnp.float32)
    out2 = jax.block_until_ready(
        normalize_by_channel_mean_std(x2, mean4, std4, block_budget_bytes=32 << 10))
    ref2 = _reference(x2, mean4, std4)
    assert jnp.allclose(out2, ref2, rtol=1e-5, atol=1e-5)

    # --- Test 3: bf16 input, divisor-TN column tiling (L=50176 -> TN divides L) ---
    k3 = jax.random.PRNGKey(2)
    x3 = jax.random.uniform(k3, (2, 3, 224, 224), dtype=jnp.float32).astype(jnp.bfloat16)
    out3 = jax.block_until_ready(
        normalize_by_channel_mean_std(x3, mean3, std3, block_budget_bytes=256 << 10))
    ref3 = _reference(x3, mean3, std3)
    assert out3.dtype == jnp.bfloat16
    assert jnp.allclose(out3.astype(jnp.float32), ref3, rtol=5e-2, atol=5e-2)

    print("KERNEL_OK")
</pallas_src>

<mosaic_0001>
module attributes {stable_mosaic.version = 11 : i64} {
  func.func @_normalize_kernel(%arg0: i32, %arg1: i32, %arg2: memref<8x256xf32, #tpu.memory_space<vmem>>, %arg3: memref<8x1xf32, #tpu.memory_space<vmem>>, %arg4: memref<8x1xf32, #tpu.memory_space<vmem>>, %arg5: memref<8x256xf32, #tpu.memory_space<vmem>>) attributes {dimension_semantics = [#tpu.dimension_semantics<parallel>, #tpu.dimension_semantics<parallel>], iteration_bounds = array<i64: 1, 1>, scalar_prefetch = 0 : i64, scratch_operands = 0 : i64, tpu.core_type = #tpu.core_type<tc>, window_params = [{transform_indices = @transform_0, window_bounds = array<i64: 8, 256>}, {transform_indices = @transform_1, window_bounds = array<i64: 8, 1>}, {transform_indices = @transform_2, window_bounds = array<i64: 8, 1>}, {transform_indices = @transform_3, window_bounds = array<i64: 8, 256>}]} {
    %c0 = arith.constant 0 : index
    %c0_0 = arith.constant 0 : index
    %0 = vector.load %arg2[%c0, %c0_0] : memref<8x256xf32, #tpu.memory_space<vmem>>, vector<8x256xf32>
    %c0_1 = arith.constant 0 : index
    %c0_2 = arith.constant 0 : index
    %1 = vector.load %arg3[%c0_1, %c0_2] : memref<8x1xf32, #tpu.memory_space<vmem>>, vector<8x1xf32>
    %2 = vector.broadcast %1 : vector<8x1xf32> to vector<8x256xf32>
    %3 = arith.mulf %0, %2 : vector<8x256xf32>
    %c0_3 = arith.constant 0 : index
    %c0_4 = arith.constant 0 : index
    %4 = vector.load %arg4[%c0_3, %c0_4] : memref<8x1xf32, #tpu.memory_space<vmem>>, vector<8x1xf32>
    %5 = vector.broadcast %4 : vector<8x1xf32> to vector<8x256xf32>
    %6 = arith.addf %3, %5 : vector<8x256xf32>
    %c0_5 = arith.constant 0 : index
    %c0_6 = arith.constant 0 : index
    %7 = vector.load %arg5[%c0_5, %c0_6] : memref<8x256xf32, #tpu.memory_space<vmem>>, vector<8x256xf32>
    tpu.vector_store %arg5[%c0_5, %c0_6], %6 {strides = array<i32>} : memref<8x256xf32, #tpu.memory_space<vmem>>, vector<8x256xf32>,
    return
  }
  func.func @transform_0(%arg0: i32, %arg1: i32) -> (i32, i32) {
    %c0_i32 = arith.constant 0 : i32
    return %arg0, %arg1 : i32, i32
  }
  func.func @transform_1(%arg0: i32, %arg1: i32) -> (i32, i32) {
    %c0_i32 = arith.constant 0 : i32
    %c0_i32_0 = arith.constant 0 : i32
    return %arg0, %c0_i32 : i32, i32
  }
  func.func @transform_2(%arg0: i32, %arg1: i32) -> (i32, i32) {
    %c0_i32 = arith.constant 0 : i32
    %c0_i32_0 = arith.constant 0 : i32
    return %arg0, %c0_i32 : i32, i32
  }
  func.func @transform_3(%arg0: i32, %arg1: i32) -> (i32, i32) {
    %c0_i32 = arith.constant 0 : i32
    return %arg0, %arg1 : i32, i32
  }
}

</mosaic_0001>

<llo_original>
// kernel: tpu_custom_call.1
$region0: #{tpu_custom_call.1}
  #allocation0 [shape = 'u32[]', space=smem, size = 0x4, offset = 0x4, fixed_abs, tag = 'smem constant byte address 0x4 - core index']
  #allocation1 [shape = 'u32[144,128]{1,0:T(1,128)}', space=vmem, size = 0x12000, scoped, tag = 'internal scratch']
  %s0 = inlined_call_operand.vmem [shape: f32[8,256], index: 0, kind: input, shape index: {}]
  %s1 = inlined_call_operand.vmem [shape: f32[8,1], index: 1, kind: input, shape index: {}]
  %s2 = inlined_call_operand.vmem [shape: f32[8,1], index: 2, kind: input, shape index: {}]
  %s3 = inlined_call_operand.hbm [shape: f32[8,256], index: 3, kind: output, shape index: {}]
  %s4 = sld [smem:[#allocation0]]
  $region22: #{tpu_custom_call.1} parent=0
    _
  %s6 = ssub.s32 1, %s4
  %s7 = scalar_select 0, %s6, %s4
  $region1: #{tpu_custom_call.1} parent=0
    #allocation2 [shape = 'u8[8192]{0}', space=vmem, size = 0x2000, scoped, tag = 'output window, operand 0, single buffered']
    #allocation3 [shape = 's32[1]{0}', space=sflag, size = 0x4, scoped, tag = 'scoped memory for tpu_custom_call.1']
    %8 = vsyncpa [#allocation3], 0
    // Predicated region
    $region2: #{tpu_custom_call.1} parent=1 // pred_check
      _
    $region3: #{tpu_custom_call.1} parent=1 // pred_check_branch
      %10 = sbr.rel (0) target = $region5
    $region4: #{tpu_custom_call.1} parent=1 // pred_region
      _
    $region5: #{tpu_custom_call.1} parent=1 // pred_fallthru
      _
    // Predicated region
    $region6: #{tpu_custom_call.1} parent=1 // pred_check
      _
    $region7: #{tpu_custom_call.1} parent=1 // pred_check_branch
      %12 = sbr.rel (0) target = $region9
    $region8: #{tpu_custom_call.1} parent=1 // pred_region
      _
    $region9: #{tpu_custom_call.1} parent=1 // pred_fallthru
      _
    // Predicated region
    $region10: #{tpu_custom_call.1} parent=1 // pred_check
      _
    $region11: #{tpu_custom_call.1} parent=1 // pred_check_branch
      %14 = sbr.rel (0) target = $region13
    $region12: #{tpu_custom_call.1} parent=1 // pred_region
      _
    $region13: #{tpu_custom_call.1} parent=1 // pred_fallthru
      _
    %v15 = vld [vmem:[%s0] sm:$0xff]
    %v16 = vld [vmem:[%s0 + $0x8] sm:$0xff]
    %v17 = vld [vmem:[%s1] sm:$0xff]
    %19 = vset.pattern.permute.xlu0 0
    %20 = vperm.xlu0 %19, %v17
    %v21 = vpop.permute.xlu0 %20
    %v23 = vmul.f32 %v15, %v21
    %v24 = vmul.f32 %v16, %v21
    %v25 = vld [vmem:[%s2] sm:$0xff]
    %27 = vset.pattern.permute.xlu0 0
    %28 = vperm.xlu0 %27, %v25
    %v29 = vpop.permute.xlu0 %28
    %v31 = vadd.f32 %v23, %v29
    %v32 = vadd.f32 %v24, %v29
    %33 = vst [vmem:[#allocation2] sm:$0xff] %v31
    %34 = vst [vmem:[#allocation2 + $0x8] sm:$0xff] %v32
    // Predicated region
    $region14: #{tpu_custom_call.1} parent=1 // pred_check
      _
    $region15: #{tpu_custom_call.1} parent=1 // pred_check_branch
      %36 = sbr.rel (0) target = $region17
    $region16: #{tpu_custom_call.1} parent=1 // pred_region
      %s38 = ssub.s32 256, 256
      %39 = vsyncadd [#allocation3], %s38
      %s41 = sshll.u32 [#allocation2], 4
      %s42 = int_to_ptr.vmem [resolvable:$true] %s41
      %44 = dma.vmem_to_hbm [thread:$0]  %s42, 256, %s3, [#allocation3]
    $region17: #{tpu_custom_call.1} parent=1 // pred_fallthru
      _
    // Predicated region
    $region18: #{tpu_custom_call.1} parent=1 // pred_check
      _
    $region19: #{tpu_custom_call.1} parent=1 // pred_check_branch
      %46 = sbr.rel (0) target = $region21
    $region20: #{tpu_custom_call.1} parent=1 // pred_region
      %47 = dma.done [#allocation3], 256
    $region21: #{tpu_custom_call.1} parent=1 // pred_fallthru
      _
    %48 = vsyncpa [#allocation3], 1

</llo_original>
